<compile_context>
chip_gen: v7x
topology: tpu7x:2x2x1
jax: 0.10.0
libtpu: 0.0.40
codegen_flags: <defaults>
</compile_context>

<pallas_src>
import functools
import math

import jax
import jax.numpy as jnp
from jax import lax
from jax.experimental import pallas as pl
from jax.experimental.pallas import tpu as pltpu


def _round_up(n, m):
    return ((n + m - 1) // m) * m


def _choose_tiling(batch, max_rows_per_step):
    """Single grid step for realistic batches; even multi-step grid for huge ones (v7x)."""
    rows8 = _round_up(batch, 8)
    if rows8 <= max_rows_per_step:
        return 1, rows8
    num_tiles = -(-rows8 // max_rows_per_step)      # cdiv
    num_tiles += num_tiles % 2                      # even step count -> both v7x TCs busy
    tile_m = _round_up(-(-batch // num_tiles), 8)
    return num_tiles, tile_m


def critic_kernel(x_ref, w1_ref, b1_ref, w2_ref, b2_ref, w3_ref, b3_ref, o_ref,
                  *, compute_dtype):
    # x arrives in f32; the (optional) low-precision cast for the MXU happens here on the
    # VPU so the wrapper never rewrites x to HBM.
    x = x_ref[...].astype(compute_dtype)

    # fc1: (TM, S) @ (S, 128) on the MXU, f32 accumulation; bias + ReLU on the VPU in f32.
    h1 = jnp.dot(x, w1_ref[...], preferred_element_type=jnp.float32)
    h1 = jnp.maximum(h1 + b1_ref[...], 0.0)

    # fc2: (TM, 128) @ (128, 256); cast activations to the weight dtype (no-op for f32).
    h2 = jnp.dot(h1.astype(w2_ref.dtype), w2_ref[...],
                 preferred_element_type=jnp.float32)
    h2 = jnp.maximum(h2 + b2_ref[...], 0.0)

    # value head: Linear(256 -> 1), computed directly lane-dense as
    #   (1, 256) . (TM, 256)^T -> (1, TM)
    # so the per-step store is an unmasked, lane-dense row instead of a 1-lane-wide column.
    v = lax.dot_general(w3_ref[...], h2, (((1,), (1,)), ((), ())),
                        preferred_element_type=jnp.float32)          # (1, TM)
    v = v + b3_ref[0, 0]                                             # scalar bias from SMEM
    o_ref[...] = jnp.reshape(v, (1, 1, v.shape[-1]))                 # (1, 1, TM) block


def critic_forward(x, params, *, max_rows_per_step=2048, compute_dtype=jnp.float32):
    """Fused critic MLP. x: [batch, state_dim] f32. Returns [batch, 1] f32."""
    w1, b1, w2, b2, w3, b3 = params
    batch, state_dim = x.shape
    hidden1 = w1.shape[1]
    hidden2 = w2.shape[1]

    # value-head weight as a (1, 256) f32 row (resident in VMEM), bias as an SMEM scalar.
    w3r = w3.reshape(1, hidden2).astype(jnp.float32)
    b3s = b3.reshape(1, 1).astype(jnp.float32)

    # Only the MXU weight operands are pre-cast (tiny, one-time); x is cast in-kernel and
    # biases / value head stay f32 so bias+ReLU runs in f32 on every generation.
    w1c = w1.astype(compute_dtype)
    w2c = w2.astype(compute_dtype)

    num_tiles, tile_m = _choose_tiling(batch, max_rows_per_step)
    padded = num_tiles * tile_m
    if padded != batch:                     # at most a few rows of padding (usually a no-op)
        x = jnp.pad(x, ((0, padded - batch), (0, 0)))
    grid = (num_tiles,)

    w_itemsize = jnp.dtype(compute_dtype).itemsize
    flops = 2 * padded * (state_dim * hidden1 + hidden1 * hidden2 + hidden2)
    bytes_accessed = (
        padded * state_dim * 4                               # x (f32 in HBM)
        + state_dim * hidden1 * w_itemsize                   # w1
        + hidden1 * hidden2 * w_itemsize                     # w2
        + (hidden1 + hidden2 + hidden2 + 1) * 4              # b1, b2, w3 row, b3
        + padded * 4                                         # output
    )

    def resident(shape):
        # Full-array block with a constant index map -> stays in VMEM across grid steps.
        return pl.BlockSpec(shape, lambda i: (0, 0))

    kernel = functools.partial(critic_kernel, compute_dtype=compute_dtype)

    out = pl.pallas_call(
        kernel,
        # Lane-dense output: one (1, tile_m) row of values per grid step.
        out_shape=jax.ShapeDtypeStruct((num_tiles, 1, tile_m), jnp.float32),
        grid=grid,
        in_specs=[
            pl.BlockSpec((tile_m, state_dim), lambda i: (i, 0)),   # x tile (pipelined)
            resident((state_dim, hidden1)),                        # w1
            resident((1, hidden1)),                                # b1
            resident((hidden1, hidden2)),                          # w2
            resident((1, hidden2)),                                # b2
            resident((1, hidden2)),                                # w3 row
            pl.BlockSpec(memory_space=pltpu.MemorySpace.SMEM),     # b3 scalar
        ],
        out_specs=pl.BlockSpec((1, 1, tile_m), lambda i: (i, 0, 0)),
        compiler_params=pltpu.CompilerParams(
            dimension_semantics=("parallel",)),
        cost_estimate=pl.CostEstimate(
            flops=flops, transcendentals=0, bytes_accessed=bytes_accessed),
    )(x, w1c, b1, w2c, b2, w3r, b3s)

    # (num_tiles, 1, tile_m) -> (batch, 1); row-major flatten preserves batch order.
    return out.reshape(-1)[:batch].reshape(batch, 1)


def init_params(key, state_dim):
    """Mimics PyTorch default Linear init: uniform(-1/sqrt(fan_in), 1/sqrt(fan_in)).
    Weights stored pre-transposed as [in_features, out_features]."""
    dims = [(state_dim, 128), (128, 256), (256, 1)]
    params = []
    for fan_in, fan_out in dims:
        key, kw, kb = jax.random.split(key, 3)
        bound = 1.0 / math.sqrt(fan_in)
        w = jax.random.uniform(kw, (fan_in, fan_out), jnp.float32, -bound, bound)
        b = jax.random.uniform(kb, (1, fan_out), jnp.float32, -bound, bound)
        params.extend([w, b])
    return tuple(params)


def critic_reference(x, params, compute_dtype=jnp.float32):
    """Plain-JAX reference with the same (optional) MXU-operand casting."""
    w1, b1, w2, b2, w3, b3 = params
    h1 = jnp.dot(x.astype(compute_dtype), w1.astype(compute_dtype),
                 preferred_element_type=jnp.float32) + b1
    h1 = jnp.maximum(h1, 0.0)
    h2 = jnp.dot(h1.astype(compute_dtype), w2.astype(compute_dtype),
                 preferred_element_type=jnp.float32) + b2
    h2 = jnp.maximum(h2, 0.0)
    return jnp.dot(h2, w3, preferred_element_type=jnp.float32) + b3


if __name__ == "__main__":
    # LunarLander-v2 observation space has 8 dims.
    state_dim = 8
    key = jax.random.PRNGKey(0)
    key, kp = jax.random.split(key)
    params = init_params(kp, state_dim)

    # 1) Tiny batch: single grid step, f32 end-to-end.
    key, kx = jax.random.split(key)
    x_small = jax.random.normal(kx, (8, state_dim), jnp.float32)
    v_small = jax.block_until_ready(critic_forward(x_small, params))
    ref_small = critic_reference(x_small, params)
    assert v_small.shape == (8, 1)
    assert jnp.allclose(v_small, ref_small, atol=2e-3, rtol=2e-3)

    # 2) Non-multiple-of-8 batch: tiny pad (300 -> 304), still a single grid step.
    key, kx = jax.random.split(key)
    x_mid = jax.random.normal(kx, (300, state_dim), jnp.float32)
    v_mid = jax.block_until_ready(critic_forward(x_mid, params))
    ref_mid = critic_reference(x_mid, params)
    assert v_mid.shape == (300, 1)
    assert jnp.allclose(v_mid, ref_mid, atol=2e-3, rtol=2e-3)

    # 3) bf16 MXU-operand path (f32 accumulation): the v6e/v7x fast path.
    key, kx = jax.random.split(key)
    x_big = jax.random.normal(kx, (512, state_dim), jnp.float32)
    v_big = jax.block_until_ready(
        critic_forward(x_big, params, compute_dtype=jnp.bfloat16))
    ref_big = critic_reference(x_big, params, compute_dtype=jnp.bfloat16)
    assert v_big.shape == (512, 1)
    assert jnp.allclose(v_big, ref_big, atol=3e-2, rtol=3e-2)

    # 4) Force a multi-step (even) grid: exercises tiling, the "parallel" batch axis
    #    (both TCs on v7x) and the lane-dense per-step output rows.
    key, kx = jax.random.split(key)
    x_tiled = jax.random.normal(kx, (1024, state_dim), jnp.float32)
    v_tiled = jax.block_until_ready(
        critic_forward(x_tiled, params, max_rows_per_step=256))
    ref_tiled = critic_reference(x_tiled, params)
    assert v_tiled.shape == (1024, 1)
    assert jnp.allclose(v_tiled, ref_tiled, atol=2e-3, rtol=2e-3)

    print("KERNEL_OK")
</pallas_src>

<mosaic_0001>
module attributes {stable_mosaic.version = 11 : i64} {
  func.func @critic_kernel(%arg0: i32, %arg1: memref<8x8xf32, #tpu.memory_space<vmem>>, %arg2: memref<8x128xf32, #tpu.memory_space<vmem>>, %arg3: memref<1x128xf32, #tpu.memory_space<vmem>>, %arg4: memref<128x256xf32, #tpu.memory_space<vmem>>, %arg5: memref<1x256xf32, #tpu.memory_space<vmem>>, %arg6: memref<1x256xf32, #tpu.memory_space<vmem>>, %arg7: memref<1x1xf32, #tpu.memory_space<smem>>, %arg8: memref<1x1x8xf32, #tpu.memory_space<vmem>>) attributes {dimension_semantics = [#tpu.dimension_semantics<parallel>], iteration_bounds = array<i64: 1>, scalar_prefetch = 0 : i64, scratch_operands = 0 : i64, tpu.core_type = #tpu.core_type<tc>, window_params = [{transform_indices = @transform_0, window_bounds = array<i64: 8, 8>}, {pipeline_mode = #tpu.pipeline_mode<synchronous>, transform_indices = @transform_1, window_bounds = array<i64: 8, 128>}, {pipeline_mode = #tpu.pipeline_mode<synchronous>, transform_indices = @transform_2, window_bounds = array<i64: 1, 128>}, {pipeline_mode = #tpu.pipeline_mode<synchronous>, transform_indices = @transform_3, window_bounds = array<i64: 128, 256>}, {pipeline_mode = #tpu.pipeline_mode<synchronous>, transform_indices = @transform_4, window_bounds = array<i64: 1, 256>}, {pipeline_mode = #tpu.pipeline_mode<synchronous>, transform_indices = @transform_5, window_bounds = array<i64: 1, 256>}, {transform_indices = @transform_6, window_bounds = array<i64: 1, 1>}, {transform_indices = @transform_7, window_bounds = array<i64: 1, 1, 8>}]} {
    %c0 = arith.constant 0 : index
    %c0_0 = arith.constant 0 : index
    %0 = vector.load %arg1[%c0, %c0_0] : memref<8x8xf32, #tpu.memory_space<vmem>>, vector<8x8xf32>
    %c0_1 = arith.constant 0 : index
    %c0_2 = arith.constant 0 : index
    %1 = vector.load %arg2[%c0_1, %c0_2] : memref<8x128xf32, #tpu.memory_space<vmem>>, vector<8x128xf32>
    %cst = arith.constant dense<0.000000e+00> : vector<8x128xf32>
    %2 = tpu.matmul %0, %1, %cst {dimension_numbers = #tpu.dot_dimension_numbers<[1], [0], [0], [1], [0, 0, 1, 1], [], []>} : vector<8x8xf32>, vector<8x128xf32>, vector<8x128xf32> -> vector<8x128xf32>
    %c0_3 = arith.constant 0 : index
    %c0_4 = arith.constant 0 : index
    %3 = vector.load %arg3[%c0_3, %c0_4] : memref<1x128xf32, #tpu.memory_space<vmem>>, vector<1x128xf32>
    %4 = vector.broadcast %3 : vector<1x128xf32> to vector<8x128xf32>
    %5 = arith.addf %2, %4 : vector<8x128xf32>
    %cst_5 = arith.constant 0.000000e+00 : f32
    %6 = vector.broadcast %cst_5 : f32 to vector<8x128xf32>
    %7 = arith.maximumf %5, %6 : vector<8x128xf32>
    %c0_6 = arith.constant 0 : index
    %c0_7 = arith.constant 0 : index
    %8 = vector.load %arg4[%c0_6, %c0_7] : memref<128x256xf32, #tpu.memory_space<vmem>>, vector<128x256xf32>
    %cst_8 = arith.constant dense<0.000000e+00> : vector<8x256xf32>
    %9 = tpu.matmul %7, %8, %cst_8 {dimension_numbers = #tpu.dot_dimension_numbers<[1], [0], [0], [1], [0, 0, 1, 1], [], []>} : vector<8x128xf32>, vector<128x256xf32>, vector<8x256xf32> -> vector<8x256xf32>
    %c0_9 = arith.constant 0 : index
    %c0_10 = arith.constant 0 : index
    %10 = vector.load %arg5[%c0_9, %c0_10] : memref<1x256xf32, #tpu.memory_space<vmem>>, vector<1x256xf32>
    %11 = vector.broadcast %10 : vector<1x256xf32> to vector<8x256xf32>
    %12 = arith.addf %9, %11 : vector<8x256xf32>
    %cst_11 = arith.constant 0.000000e+00 : f32
    %13 = vector.broadcast %cst_11 : f32 to vector<8x256xf32>
    %14 = arith.maximumf %12, %13 : vector<8x256xf32>
    %c0_12 = arith.constant 0 : index
    %c0_13 = arith.constant 0 : index
    %15 = vector.load %arg6[%c0_12, %c0_13] : memref<1x256xf32, #tpu.memory_space<vmem>>, vector<1x256xf32>
    %cst_14 = arith.constant dense<0.000000e+00> : vector<1x8xf32>
    %16 = tpu.matmul %15, %14, %cst_14 {dimension_numbers = #tpu.dot_dimension_numbers<[1], [1], [0], [0], [0, 0, 1, 0], [], []>} : vector<1x256xf32>, vector<8x256xf32>, vector<1x8xf32> -> vector<1x8xf32>
    %c0_15 = arith.constant 0 : index
    %c0_16 = arith.constant 0 : index
    %17 = memref.load %arg7[%c0_15, %c0_16] : memref<1x1xf32, #tpu.memory_space<smem>>
    %18 = vector.broadcast %17 : f32 to vector<1x8xf32>
    %19 = arith.addf %16, %18 : vector<1x8xf32>
    %20 = vector.shape_cast %19 : vector<1x8xf32> to vector<1x1x8xf32>
    %c0_17 = arith.constant 0 : index
    %c0_18 = arith.constant 0 : index
    %c0_19 = arith.constant 0 : index
    %21 = vector.load %arg8[%c0_17, %c0_18, %c0_19] : memref<1x1x8xf32, #tpu.memory_space<vmem>>, vector<1x1x8xf32>
    tpu.vector_store %arg8[%c0_17, %c0_18, %c0_19], %20 {strides = array<i32>} : memref<1x1x8xf32, #tpu.memory_space<vmem>>, vector<1x1x8xf32>,
    return
  }
  func.func @transform_0(%arg0: i32) -> (i32, i32) {
    %c0_i32 = arith.constant 0 : i32
    %c0_i32_0 = arith.constant 0 : i32
    return %arg0, %c0_i32 : i32, i32
  }
  func.func @transform_1(%arg0: i32) -> (i32, i32) {
    %c0_i32 = arith.constant 0 : i32
    %c0_i32_0 = arith.constant 0 : i32
    %c0_i32_1 = arith.constant 0 : i32
    return %c0_i32, %c0_i32_0 : i32, i32
  }
  func.func @transform_2(%arg0: i32) -> (i32, i32) {
    %c0_i32 = arith.constant 0 : i32
    %c0_i32_0 = arith.constant 0 : i32
    %c0_i32_1 = arith.constant 0 : i32
    return %c0_i32, %c0_i32_0 : i32, i32
  }
  func.func @transform_3(%arg0: i32) -> (i32, i32) {
    %c0_i32 = arith.constant 0 : i32
    %c0_i32_0 = arith.constant 0 : i32
    %c0_i32_1 = arith.constant 0 : i32
    return %c0_i32, %c0_i32_0 : i32, i32
  }
  func.func @transform_4(%arg0: i32) -> (i32, i32) {
    %c0_i32 = arith.constant 0 : i32
    %c0_i32_0 = arith.constant 0 : i32
    %c0_i32_1 = arith.constant 0 : i32
    return %c0_i32, %c0_i32_0 : i32, i32
  }
  func.func @transform_5(%arg0: i32) -> (i32, i32) {
    %c0_i32 = arith.constant 0 : i32
    %c0_i32_0 = arith.constant 0 : i32
    %c0_i32_1 = arith.constant 0 : i32
    return %c0_i32, %c0_i32_0 : i32, i32
  }
  func.func @transform_6(%arg0: i32) -> (i32, i32) {
    %c0_i32 = arith.constant 0 : i32
    %c0_i32_0 = arith.constant 0 : i32
    %c0_i32_1 = arith.constant 0 : i32
    return %c0_i32, %c0_i32_0 : i32, i32
  }
  func.func @transform_7(%arg0: i32) -> (i32, i32, i32) {
    %c0_i32 = arith.constant 0 : i32
    %c0_i32_0 = arith.constant 0 : i32
    %c0_i32_1 = arith.constant 0 : i32
    return %arg0, %c0_i32, %c0_i32_0 : i32, i32, i32
  }
}

</mosaic_0001>

<llo_original>
// kernel: tpu_custom_call.1
$region0: #{tpu_custom_call.1}
  #allocation0 [shape = 'u32[]', space=smem, size = 0x4, offset = 0x4, fixed_abs, tag = 'smem constant byte address 0x4 - core index']
  #allocation1 [shape = 'u32[144,128]{1,0:T(1,128)}', space=vmem, size = 0x12000, scoped, tag = 'internal scratch']
  #allocation2 [shape = 'f32[1,1]{1,0:T(1,128)S(6)}', space=smem, size = 0x200, scoped, tag = 'scoped memory for tpu_custom_call.1']
  %s0 = inlined_call_operand.hbm [shape: f32[8,8], index: 0, kind: input, shape index: {}]
  %s1 = inlined_call_operand.hbm [shape: f32[8,128], index: 1, kind: input, shape index: {}]
  %s2 = inlined_call_operand.vmem [shape: f32[1,128], index: 2, kind: input, shape index: {}]
  %s3 = inlined_call_operand.hbm [shape: f32[128,256], index: 3, kind: input, shape index: {}]
  %s4 = inlined_call_operand.vmem [shape: f32[1,256], index: 4, kind: input, shape index: {}]
  %s5 = inlined_call_operand.vmem [shape: f32[1,256], index: 5, kind: input, shape index: {}]
  %s6 = inlined_call_operand.<no memory space> [shape: f32[1,1], index: 6, kind: input, shape index: {}]
  %s7 = inlined_call_operand.hbm [shape: f32[1,1,8], index: 7, kind: output, shape index: {}]
  %s8 = sld [smem:[#allocation0]]
  $region50: #{tpu_custom_call.1} parent=0
    _
  %s10 = ssub.s32 1, %s8
  %s11 = scalar_select 0, %s10, %s8
  %12 = sst [smem:[#allocation2]] %s6
  $region1: #{tpu_custom_call.1} parent=0
    #allocation3 [shape = 'u8[4096]{0}', space=vmem, size = 0x1000, scoped, tag = 'input window, operand 0, single buffered']
    #allocation4 [shape = 's32[1]{0}', space=sflag, size = 0x4, scoped, tag = 'scoped memory for tpu_custom_call.1']
    #allocation5 [shape = 's32[1]{0}', space=sflag, size = 0x4, scoped, tag = 'scoped memory for tpu_custom_call.1']
    #allocation6 [shape = 'u8[4096]{0}', space=vmem, size = 0x1000, scoped, tag = 'input window, operand 1, single buffered']
    #allocation7 [shape = 's32[1]{0}', space=sflag, size = 0x4, scoped, tag = 'scoped memory for tpu_custom_call.1']
    #allocation8 [shape = 'u8[131072]{0}', space=vmem, size = 0x20000, scoped, tag = 'input window, operand 3, single buffered']
    #allocation9 [shape = 'u8[512]{0}', space=vmem, size = 0x400, scoped, tag = 'output window, operand 0, single buffered']
    %13 = vsyncpa [#allocation4], 0
    %14 = vsyncpa [#allocation7], 0
    %15 = vsyncpa [#allocation5], 0
    // Predicated region
    $region2: #{tpu_custom_call.1} parent=1 // pred_check
      _
    $region3: #{tpu_custom_call.1} parent=1 // pred_check_branch
      %17 = sbr.rel (0) target = $region5
    $region4: #{tpu_custom_call.1} parent=1 // pred_region
      %s19 = ssub.s32 128, 128
      %20 = vsyncadd [#allocation4], %s19
      %s22 = sshll.u32 [#allocation3], 4
      %s23 = int_to_ptr.vmem [resolvable:$true] %s22
      %25 = dma.hbm_to_vmem [thread:$0]  %s0, 128, %s23, [#allocation4]
    $region5: #{tpu_custom_call.1} parent=1 // pred_fallthru
      _
    // Predicated region
    $region6: #{tpu_custom_call.1} parent=1 // pred_check
      _
    $region7: #{tpu_custom_call.1} parent=1 // pred_check_branch
      %27 = sbr.rel (0) target = $region9
    $region8: #{tpu_custom_call.1} parent=1 // pred_region
      %s29 = ssub.s32 128, 128
      %30 = vsyncadd [#allocation7], %s29
      %s32 = sshll.u32 [#allocation6], 4
      %s33 = int_to_ptr.vmem [resolvable:$true] %s32
      %35 = dma.hbm_to_vmem [thread:$0]  %s1, 128, %s33, [#allocation7]
    $region9: #{tpu_custom_call.1} parent=1 // pred_fallthru
      _
    // Predicated region
    $region10: #{tpu_custom_call.1} parent=1 // pred_check
      _
    $region11: #{tpu_custom_call.1} parent=1 // pred_check_branch
      %37 = sbr.rel (0) target = $region13
    $region12: #{tpu_custom_call.1} parent=1 // pred_region
      _
    $region13: #{tpu_custom_call.1} parent=1 // pred_fallthru
      _
    // Predicated region
    $region14: #{tpu_custom_call.1} parent=1 // pred_check
      _
    $region15: #{tpu_custom_call.1} parent=1 // pred_check_branch
      %39 = sbr.rel (0) target = $region17
    $region16: #{tpu_custom_call.1} parent=1 // pred_region
      %s41 = ssub.s32 4096, 4096
      %42 = vsyncadd [#allocation7], %s41
      %s43 = sshll.u32 [#allocation8], 4
      %s44 = int_to_ptr.vmem [resolvable:$true] %s43
      %49 = dma.hbm_to_vmem [thread:$0]  %s3, 4096, %s44, [#allocation7], 256, 256, 16
    $region17: #{tpu_custom_call.1} parent=1 // pred_fallthru
      _
    // Predicated region
    $region18: #{tpu_custom_call.1} parent=1 // pred_check
      _
    $region19: #{tpu_custom_call.1} parent=1 // pred_check_branch
      %51 = sbr.rel (0) target = $region21
    $region20: #{tpu_custom_call.1} parent=1 // pred_region
      _
    $region21: #{tpu_custom_call.1} parent=1 // pred_fallthru
      _
    // Predicated region
    $region22: #{tpu_custom_call.1} parent=1 // pred_check
      _
    $region23: #{tpu_custom_call.1} parent=1 // pred_check_branch
      %53 = sbr.rel (0) target = $region25
    $region24: #{tpu_custom_call.1} parent=1 // pred_region
      _
    $region25: #{tpu_custom_call.1} parent=1 // pred_fallthru
      _
    // Predicated region
    $region26: #{tpu_custom_call.1} parent=1 // pred_check
      _
    $region27: #{tpu_custom_call.1} parent=1 // pred_check_branch
      %55 = sbr.rel (0) target = $region29
    $region28: #{tpu_custom_call.1} parent=1 // pred_region
      _
    $region29: #{tpu_custom_call.1} parent=1 // pred_fallthru
      _
    // Predicated region
    $region30: #{tpu_custom_call.1} parent=1 // pred_check
      _
    $region31: #{tpu_custom_call.1} parent=1 // pred_check_branch
      %57 = sbr.rel (0) target = $region33
    $region32: #{tpu_custom_call.1} parent=1 // pred_region
      %58 = dma.done [#allocation4], 128
    $region33: #{tpu_custom_call.1} parent=1 // pred_fallthru
      _
    // Predicated region
    $region34: #{tpu_custom_call.1} parent=1 // pred_check
      _
    $region35: #{tpu_custom_call.1} parent=1 // pred_check_branch
      %60 = sbr.rel (0) target = $region37
    $region36: #{tpu_custom_call.1} parent=1 // pred_region
      %61 = dma.done [#allocation7], 128
    $region37: #{tpu_custom_call.1} parent=1 // pred_fallthru
      _
    // Predicated region
    $region38: #{tpu_custom_call.1} parent=1 // pred_check
      _
    $region39: #{tpu_custom_call.1} parent=1 // pred_check_branch
      %63 = sbr.rel (0) target = $region41
    $region40: #{tpu_custom_call.1} parent=1 // pred_region
      %64 = dma.done [#allocation7], 4096
    $region41: #{tpu_custom_call.1} parent=1 // pred_fallthru
      _
    %v65 = vld [vmem:[#allocation3] sm:$0xff]
    %v66 = vld [vmem:[#allocation6] sm:$0xff]
    %v67 = vld [vmem:[%s2] sm:$0x1]
    %v69 = vlaneseq
    %v70 = vshrl.u32 %v69, 7
    %v71 = vsub.s32 0, %v70
    %v72 = vrot.slane %v67, %v71
    %vm74 = vcmask 64512
    %v76 = vsel %vm74, %v65, 0
    %78 = vmatprep.subr.mxu0 0.0
    %79 = vmatpush1.msra.mxu0 %v66
    %80 = vmatprep.subr.mxu0 0.0
    %81 = vmatpush1.msra.mxu0 0.0
    %82 = vmatprep.subr.mxu0 0.0
    %83 = vmatpush1.msra.mxu0 0.0
    %84 = vmatprep.subr.mxu0 0.0
    %85 = vmatpush1.msra.mxu0 0.0
    %86 = vmatprep.subr.mxu0 0.0
    %87 = vmatpush1.msra.mxu0 0.0
    %88 = vmatprep.subr.mxu0 0.0
    %89 = vmatpush1.msra.mxu0 0.0
    %90 = vmatprep.subr.mxu0 0.0
    %91 = vmatpush1.msra.mxu0 0.0
    %92 = vmatprep.subr.mxu0 0.0
    %93 = vmatpush1.msra.mxu0 0.0
    %94 = vmatprep.subr.mxu0 0.0
    %95 = vmatpush1.msra.mxu0 0.0
    %96 = vmatprep.subr.mxu0 0.0
    %97 = vmatpush1.msra.mxu0 0.0
    %98 = vmatprep.subr.mxu0 0.0
    %99 = vmatpush1.msra.mxu0 0.0
    %100 = vmatprep.subr.mxu0 0.0
    %101 = vmatpush1.msra.mxu0 0.0
    %102 = vmatprep.subr.mxu0 0.0
    %103 = vmatpush1.msra.mxu0 0.0
    %104 = vmatprep.subr.mxu0 0.0
    %105 = vmatpush1.msra.mxu0 0.0
    %106 = vmatprep.subr.mxu0 0.0
    %107 = vmatpush1.msra.mxu0 0.0
    %108 = vmatprep.subr.mxu0 0.0
    %109 = vmatpush1.msra.mxu0 0.0
    %110 = vmatprep.subr.mxu0 0.0
    %111 = vmatpush1.msra.mxu0 0.0
    %112 = vmatprep.subr.mxu0 0.0
    %113 = vmatpush1.msra.mxu0 0.0
    %114 = vmatprep.subr.mxu0 0.0
    %115 = vmatpush1.msra.mxu0 0.0
    %116 = vmatprep.subr.mxu0 0.0
    %117 = vmatpush1.msra.mxu0 0.0
    %118 = vmatprep.subr.mxu0 0.0
    %119 = vmatpush1.msra.mxu0 0.0
    %120 = vmatprep.subr.mxu0 0.0
    %121 = vmatpush1.msra.mxu0 0.0
    %122 = vmatprep.subr.mxu0 0.0
    %123 = vmatpush1.msra.mxu0 0.0
    %124 = vmatprep.subr.mxu0 0.0
    %125 = vmatpush1.msra.mxu0 0.0
    %126 = vmatprep.subr.mxu0 0.0
    %127 = vmatpush1.msra.mxu0 0.0
    %128 = vmatprep.subr.mxu0 0.0
    %129 = vmatpush1.msra.mxu0 0.0
    %130 = vmatprep.subr.mxu0 0.0
    %131 = vmatpush1.msra.mxu0 0.0
    %132 = vmatprep.subr.mxu0 0.0
    %133 = vmatpush1.msra.mxu0 0.0
    %134 = vmatprep.subr.mxu0 0.0
    %135 = vmatpush1.msra.mxu0 0.0
    %136 = vmatprep.subr.mxu0 0.0
    %137 = vmatpush1.msra.mxu0 0.0
    %138 = vmatprep.subr.mxu0 0.0
    %139 = vmatpush1.msra.mxu0 0.0
    %140 = vmatprep.subr.mxu0 0.0
    %141 = vmatpush1.msra.mxu0 0.0
    %142 = vmatprep.mubr.f32.mxu0 0.0
    %143 = vmatmul.mubr.f32.gmra.mrb[0].mxu0 %v76
    %v144 = vpop.f32.mrb[0].mxu0
    %v145 = vadd.f32 %v72, %v144
    %v146 = vpop.f32.mrb[0].mxu0
    %147 = vdwg.mxu0
    %v148 = vmax.f32 %v145, 0.0
    %v149 = vld [vmem:[#allocation8] sm:$0xff]
    %v150 = vld [vmem:[#allocation8 + $0x8] sm:$0xff]
    %v151 = vld [vmem:[#allocation8 + $0x10] sm:$0xff]
    %v152 = vld [vmem:[#allocation8 + $0x18] sm:$0xff]
    %v153 = vld [vmem:[#allocation8 + $0x20] sm:$0xff]
    %v154 = vld [vmem:[#allocation8 + $0x28] sm:$0xff]
    %v155 = vld [vmem:[#allocation8 + $0x30] sm:$0xff]
    %v156 = vld [vmem:[#allocation8 + $0x38] sm:$0xff]
    %v157 = vld [vmem:[#allocation8 + $0x40] sm:$0xff]
    %v158 = vld [vmem:[#allocation8 + $0x48] sm:$0xff]
    %v159 = vld [vmem:[#allocation8 + $0x50] sm:$0xff]
    %v160 = vld [vmem:[#allocation8 + $0x58] sm:$0xff]
    %v161 = vld [vmem:[#allocation8 + $0x60] sm:$0xff]
    %v162 = vld [vmem:[#allocation8 + $0x68] sm:$0xff]
    %v163 = vld [vmem:[#allocation8 + $0x70] sm:$0xff]
    %v164 = vld [vmem:[#allocation8 + $0x78] sm:$0xff]
    %v165 = vld [vmem:[#allocation8 + $0x80] sm:$0xff]
    %v166 = vld [vmem:[#allocation8 + $0x88] sm:$0xff]
    %v167 = vld [vmem:[#allocation8 + $0x90] sm:$0xff]
    %v168 = vld [vmem:[#allocation8 + $0x98] sm:$0xff]
    %v169 = vld [vmem:[#allocation8 + $0xa0] sm:$0xff]
    %v170 = vld [vmem:[#allocation8 + $0xa8] sm:$0xff]
    %v171 = vld [vmem:[#allocation8 + $0xb0] sm:$0xff]
    %v172 = vld [vmem:[#allocation8 + $0xb8] sm:$0xff]
    %v173 = vld [vmem:[#allocation8 + $0xc0] sm:$0xff]
    %v174 = vld [vmem:[#allocation8 + $0xc8] sm:$0xff]
    %v175 = vld [vmem:[#allocation8 + $0xd0] sm:$0xff]
    %v176 = vld [vmem:[#allocation8 + $0xd8] sm:$0xff]
    %v177 = vld [vmem:[#allocation8 + $0xe0] sm:$0xff]
    %v178 = vld [vmem:[#allocation8 + $0xe8] sm:$0xff]
    %v179 = vld [vmem:[#allocation8 + $0xf0] sm:$0xff]
    %v180 = vld [vmem:[#allocation8 + $0xf8] sm:$0xff]
    %v181 = vld [vmem:[%s4] sm:$0x3]
    %v183 = vlaneseq
    %v184 = vshrl.u32 %v183, 7
    %v185 = vsub.s32 0, %v184
    %v186 = vrot.slane %v181, %v185
    %v187 = vlaneseq
    %v188 = vshrl.u32 %v187, 7
    %v189 = vsub.s32 1, %v188
    %v190 = vrot.slane %v181, %v189
    %193 = vmatprep.subr.mxu0 %v150
    %194 = vmatpush1.msra.mxu0 %v149
    %195 = vmatprep.subr.mxu0 %v152
    %196 = vmatpush1.msra.mxu0 %v151
    %197 = vmatprep.subr.mxu0 %v154
    %198 = vmatpush1.msra.mxu0 %v153
    %199 = vmatprep.subr.mxu0 %v156
    %200 = vmatpush1.msra.mxu0 %v155
    %201 = vmatprep.subr.mxu0 %v158
    %202 = vmatpush1.msra.mxu0 %v157
    %203 = vmatprep.subr.mxu0 %v160
    %204 = vmatpush1.msra.mxu0 %v159
    %205 = vmatprep.subr.mxu0 %v162
    %206 = vmatpush1.msra.mxu0 %v161
    %207 = vmatprep.subr.mxu0 %v164
    %208 = vmatpush1.msra.mxu0 %v163
    %209 = vmatprep.subr.mxu0 %v166
    %210 = vmatpush1.msra.mxu0 %v165
    %211 = vmatprep.subr.mxu0 %v168
    %212 = vmatpush1.msra.mxu0 %v167
    %213 = vmatprep.subr.mxu0 %v170
    %214 = vmatpush1.msra.mxu0 %v169
    %215 = vmatprep.subr.mxu0 %v172
    %216 = vmatpush1.msra.mxu0 %v171
    %217 = vmatprep.subr.mxu0 %v174
    %218 = vmatpush1.msra.mxu0 %v173
    %219 = vmatprep.subr.mxu0 %v176
    %220 = vmatpush1.msra.mxu0 %v175
    %221 = vmatprep.subr.mxu0 %v178
    %222 = vmatpush1.msra.mxu0 %v177
    %223 = vmatprep.subr.mxu0 %v180
    %224 = vmatpush1.msra.mxu0 %v179
    %225 = vmatprep.subr.mxu0 0.0
    %226 = vmatpush1.msra.mxu0 0.0
    %227 = vmatprep.subr.mxu0 0.0
    %228 = vmatpush1.msra.mxu0 0.0
    %229 = vmatprep.subr.mxu0 0.0
    %230 = vmatpush1.msra.mxu0 0.0
    %231 = vmatprep.subr.mxu0 0.0
    %232 = vmatpush1.msra.mxu0 0.0
    %233 = vmatprep.subr.mxu0 0.0
    %234 = vmatpush1.msra.mxu0 0.0
    %235 = vmatprep.subr.mxu0 0.0
    %236 = vmatpush1.msra.mxu0 0.0
    %237 = vmatprep.subr.mxu0 0.0
    %238 = vmatpush1.msra.mxu0 0.0
    %239 = vmatprep.subr.mxu0 0.0
    %240 = vmatpush1.msra.mxu0 0.0
    %241 = vmatprep.subr.mxu0 0.0
    %242 = vmatpush1.msra.mxu0 0.0
    %243 = vmatprep.subr.mxu0 0.0
    %244 = vmatpush1.msra.mxu0 0.0
    %245 = vmatprep.subr.mxu0 0.0
    %246 = vmatpush1.msra.mxu0 0.0
    %247 = vmatprep.subr.mxu0 0.0
    %248 = vmatpush1.msra.mxu0 0.0
    %249 = vmatprep.subr.mxu0 0.0
    %250 = vmatpush1.msra.mxu0 0.0
    %251 = vmatprep.subr.mxu0 0.0
    %252 = vmatpush1.msra.mxu0 0.0
    %253 = vmatprep.subr.mxu0 0.0
    %254 = vmatpush1.msra.mxu0 0.0
    %255 = vmatprep.subr.mxu0 0.0
    %256 = vmatpush1.msra.mxu0 0.0
    %257 = vmatprep.mubr.f32.mxu0 0.0
    %258 = vmatmul.mubr.f32.gmra.mrb[0].mxu0 %v148
    %v259 = vpop.f32.mrb[0].mxu0
    %v260 = vadd.f32 %v186, %v259
    %v261 = vpop.f32.mrb[0].mxu0
    %v262 = vadd.f32 %v190, %v261
    %263 = vdwg.mxu0
    %v264 = vmax.f32 %v260, 0.0
    %v265 = vmax.f32 %v262, 0.0
    %v266 = vld [vmem:[%s5] sm:$0x3]
    %s267 = sld [smem:[#allocation2]]
    %v268 = vstv %s267
    %v270 = vlaneseq
    %v271 = vshrl.u32 %v270, 7
    %v272 = vsub.s32 0, %v271
    %v273 = vrot.slane %v266, %v272
    %v274 = vlaneseq
    %v275 = vshrl.u32 %v274, 7
    %v276 = vsub.s32 1, %v275
    %v277 = vrot.slane %v266, %v276
    %280 = vmatprep.subr.mxu0 %v265
    %281 = vmatpush1.xpose.msra.mxu0 %v264
    %282 = vmatprep.subr.mxu0 0.0
    %283 = vmatpush1.xpose.msra.mxu0 0.0
    %284 = vmatprep.subr.mxu0 0.0
    %285 = vmatpush1.xpose.msra.mxu0 0.0
    %286 = vmatprep.subr.mxu0 0.0
    %287 = vmatpush1.xpose.msra.mxu0 0.0
    %288 = vmatprep.subr.mxu0 0.0
    %289 = vmatpush1.xpose.msra.mxu0 0.0
    %290 = vmatprep.subr.mxu0 0.0
    %291 = vmatpush1.xpose.msra.mxu0 0.0
    %292 = vmatprep.subr.mxu0 0.0
    %293 = vmatpush1.xpose.msra.mxu0 0.0
    %294 = vmatprep.subr.mxu0 0.0
    %295 = vmatpush1.xpose.msra.mxu0 0.0
    %296 = vmatprep.subr.mxu0 0.0
    %297 = vmatpush1.xpose.msra.mxu0 0.0
    %298 = vmatprep.subr.mxu0 0.0
    %299 = vmatpush1.xpose.msra.mxu0 0.0
    %300 = vmatprep.subr.mxu0 0.0
    %301 = vmatpush1.xpose.msra.mxu0 0.0
    %302 = vmatprep.subr.mxu0 0.0
    %303 = vmatpush1.xpose.msra.mxu0 0.0
    %304 = vmatprep.subr.mxu0 0.0
    %305 = vmatpush1.xpose.msra.mxu0 0.0
    %306 = vmatprep.subr.mxu0 0.0
    %307 = vmatpush1.xpose.msra.mxu0 0.0
    %308 = vmatprep.subr.mxu0 0.0
    %309 = vmatpush1.xpose.msra.mxu0 0.0
    %310 = vmatprep.subr.mxu0 0.0
    %311 = vmatpush1.xpose.msra.mxu0 0.0
    %312 = vmatprep.subr.mxu0 0.0
    %313 = vmatpush1.xpose.msra.mxu0 0.0
    %314 = vmatprep.subr.mxu0 0.0
    %315 = vmatpush1.xpose.msra.mxu0 0.0
    %316 = vmatprep.subr.mxu0 0.0
    %317 = vmatpush1.xpose.msra.mxu0 0.0
    %318 = vmatprep.subr.mxu0 0.0
    %319 = vmatpush1.xpose.msra.mxu0 0.0
    %320 = vmatprep.subr.mxu0 0.0
    %321 = vmatpush1.xpose.msra.mxu0 0.0
    %322 = vmatprep.subr.mxu0 0.0
    %323 = vmatpush1.xpose.msra.mxu0 0.0
    %324 = vmatprep.subr.mxu0 0.0
    %325 = vmatpush1.xpose.msra.mxu0 0.0
    %326 = vmatprep.subr.mxu0 0.0
    %327 = vmatpush1.xpose.msra.mxu0 0.0
    %328 = vmatprep.subr.mxu0 0.0
    %329 = vmatpush1.xpose.msra.mxu0 0.0
    %330 = vmatprep.subr.mxu0 0.0
    %331 = vmatpush1.xpose.msra.mxu0 0.0
    %332 = vmatprep.subr.mxu0 0.0
    %333 = vmatpush1.xpose.msra.mxu0 0.0
    %334 = vmatprep.subr.mxu0 0.0
    %335 = vmatpush1.xpose.msra.mxu0 0.0
    %336 = vmatprep.subr.mxu0 0.0
    %337 = vmatpush1.xpose.msra.mxu0 0.0
    %338 = vmatprep.subr.mxu0 0.0
    %339 = vmatpush1.xpose.msra.mxu0 0.0
    %340 = vmatprep.subr.mxu0 0.0
    %341 = vmatpush1.xpose.msra.mxu0 0.0
    %342 = vmatprep.subr.mxu0 0.0
    %343 = vmatpush1.xpose.msra.mxu0 0.0
    %344 = vmatprep.mubr.f32.mxu0 %v277
    %345 = vmatmul.mubr.f32.gmra.mrb[0].mxu0 %v273
    %v346 = vpop.f32.mrb[0].mxu0
    %v347 = vadd.f32 %v268, %v346
    %v348 = vpop.f32.mrb[0].mxu0
    %349 = vdwg.mxu0
    %vm350 = vcmask 57344
    %351 = vst.msk [vmem:[#allocation9] sm:$0x1] %vm350, %v347
    // Predicated region
    $region42: #{tpu_custom_call.1} parent=1 // pred_check
      _
    $region43: #{tpu_custom_call.1} parent=1 // pred_check_branch
      %353 = sbr.rel (0) target = $region45
    $region44: #{tpu_custom_call.1} parent=1 // pred_region
      %s355 = ssub.s32 16, 16
      %356 = vsyncadd [#allocation5], %s355
      %s358 = sshll.u32 [#allocation9], 4
      %s359 = int_to_ptr.vmem [resolvable:$true] %s358
      %361 = dma.vmem_to_hbm [thread:$0]  %s359, 16, %s7, [#allocation5]
    $region45: #{tpu_custom_call.1} parent=1 // pred_fallthru
      _
    // Predicated region
    $region46: #{tpu_custom_call.1} parent=1 // pred_check
      _
    $region47: #{tpu_custom_call.1} parent=1 // pred_check_branch
      %363 = sbr.rel (0) target = $region49
    $region48: #{tpu_custom_call.1} parent=1 // pred_region
      %364 = dma.done [#allocation5], 16
    $region49: #{tpu_custom_call.1} parent=1 // pred_fallthru
      _
    %365 = vsyncpa [#allocation4], 1
    %366 = vsyncpa [#allocation7], 1
    %367 = vsyncpa [#allocation5], 1

</llo_original>
